<compile_context>
chip_gen: v7x
topology: tpu7x:2x2x1
jax: 0.10.0
libtpu: 0.0.40
codegen_flags: <defaults>
</compile_context>

<pallas_src>
import jax
import jax.numpy as jnp
import numpy as np
from jax.experimental import pallas as pl
from jax.experimental.pallas import tpu as pltpu


# ------------------------------- helpers -----------------------------------

def _round_up(x, m):
    return (x + m - 1) // m * m


def _cdiv(a, b):
    return -(-a // b)


_HAS_BUFFERED = hasattr(pl, "Buffered")


def _spec(block, index_map, buffers=None):
    """BlockSpec with an optional explicit pipeline buffer count."""
    if buffers is not None and _HAS_BUFFERED:
        try:
            return pl.BlockSpec(block, index_map, pipeline_mode=pl.Buffered(buffers))
        except TypeError:  # older jax without the pipeline_mode kwarg
            pass
    return pl.BlockSpec(block, index_map)


def _device_is_v7():
    try:
        kind = jax.devices()[0].device_kind.lower()
        return ("v7" in kind) or ("7x" in kind)
    except Exception:
        return False


def _vmem_budget_bytes():
    cap = 0
    try:
        info = pltpu.get_tpu_info()
        cap = int(getattr(info, "vmem_capacity_bytes", 0) or 0)
    except Exception:
        cap = 0
    if cap <= 0:
        cap = 64 * 1024 * 1024 if _device_is_v7() else 128 * 1024 * 1024
    # Leave ~15% headroom for compiler-internal scratch / semaphores.
    return int(cap * 0.85)


def _tm_candidates(tm_max, row_mult, start=1024):
    """Descending token-tile candidates, multiples of row_mult, <= tm_max."""
    cands = []
    for c in (1024, 512, 384, 256, 192, 128, 64, 32, 16, 8):
        if c > start:
            continue
        c = min(_round_up(c, row_mult), tm_max)
        if c not in cands:
            cands.append(c)
    return sorted(set(cands), reverse=True)


def _resident_need(tm, d_p, h_p, in_isz, out_isz, w_buf):
    """Conservative VMEM bytes for the fused (weights fully resident) config."""
    return (2 * tm * d_p * in_isz                 # x tiles (double buffered)
            + 2 * tm * d_p * out_isz              # out tiles (double buffered)
            + w_buf * 2 * d_p * h_p * in_isz      # W1 + W2 slabs
            + w_buf * (h_p + d_p) * 4             # b1, b2 (f32)
            + tm * h_p * (4 + in_isz)             # f32 hidden + bf16 cast copy
            + tm * d_p * 4)                       # f32 result before bias/cast


def _streamed_need(tm, th, d_p, in_isz, out_isz, w_buf):
    """Conservative VMEM bytes for the hidden-tiled (streamed weights) config."""
    return (2 * tm * d_p * in_isz                 # x tiles
            + 2 * tm * d_p * out_isz              # out tiles
            + w_buf * 2 * d_p * th * in_isz       # W1/W2 slabs (w_buf-deep)
            + w_buf * th * 4 + d_p * 4            # b1 slab, resident b2
            + tm * th * (4 + in_isz)              # f32 hidden + cast copy
            + tm * d_p * 4                        # f32 accumulator scratch
            + tm * d_p * 4)                       # f32 partial dot result


def _select_streamed(tm_cap, row_mult, d_p, h_p, in_isz, out_isz, budget, is_v7):
    """Pick (tm, th) when weights cannot be fully resident.

    tm is prioritised (weight HBM traffic ~ (n_tok/tm) * weight_bytes);
    th is kept a multiple of 256 where possible (full MXU passes on v6e/v7x)."""
    tm_start = 512 if is_v7 else 1024
    th_cands = [t for t in (2048, 1024, 512, 256, 128) if t <= h_p]
    if not th_cands:
        th_cands = [h_p]
    tm_cands = _tm_candidates(tm_cap, row_mult, start=tm_start)
    for tmc in tm_cands:
        for thc in th_cands:
            if _streamed_need(tmc, thc, d_p, in_isz, out_isz, 2) <= budget:
                return tmc, thc
    # Nothing fits the budget comfortably: take the smallest configuration.
    return tm_cands[-1], th_cands[-1]


def _pad2(a, rows, cols):
    if rows == 0 and cols == 0:
        return a
    return jnp.pad(a, ((0, rows), (0, cols)))


# ------------------------------- kernels -----------------------------------

def _ffn_fused_kernel(x_ref, w1_ref, b1_ref, w2_ref, b2_ref, o_ref):
    # Weights fully resident in VMEM; one token tile per grid step.
    h = jnp.dot(x_ref[...], w1_ref[...], preferred_element_type=jnp.float32)
    h = jnp.maximum(h + b1_ref[...], 0.0)                       # bias + ReLU (f32)
    y = jnp.dot(h.astype(w2_ref.dtype), w2_ref[...],
                preferred_element_type=jnp.float32)
    o_ref[...] = (y + b2_ref[...]).astype(o_ref.dtype)


def _ffn_tiled_kernel(x_ref, w1_ref, b1_ref, w2_ref, b2_ref, o_ref, acc_ref):
    # Hidden dim streamed on the trailing ("arbitrary") grid axis.
    hid = pl.program_id(1)

    @pl.when(hid == 0)
    def _():
        # Seed the accumulator with b2 so finalize is just a cast.
        acc_ref[...] = jnp.broadcast_to(b2_ref[...], acc_ref.shape)

    h = jnp.dot(x_ref[...], w1_ref[...], preferred_element_type=jnp.float32)
    h = jnp.maximum(h + b1_ref[...], 0.0)
    acc_ref[...] += jnp.dot(h.astype(w2_ref.dtype), w2_ref[...],
                            preferred_element_type=jnp.float32)

    @pl.when(hid == pl.num_programs(1) - 1)
    def _():
        o_ref[...] = acc_ref[...].astype(o_ref.dtype)


# ------------------------------- wrapper ------------------------------------

def pointwise_ffn(x, w1, b1, w2, b2, *, compute_dtype=jnp.bfloat16):
    """Pointwise FFN: y = relu(x @ w1 + b1) @ w2 + b2.

    x : [batch, seq, d_model]
    w1: [d_model, hidden]   ([in, out] layout, i.e. torch Linear.weight.T)
    b1: [hidden]
    w2: [hidden, d_model]
    b2: [d_model]
    """
    batch, seq, d_model = x.shape
    hidden = w1.shape[1]
    n_tok = batch * seq
    out_dtype = x.dtype

    # Matmul operands in compute_dtype (bf16 by default).  Biases stay f32 —
    # they are added to f32 values in-kernel, so this costs nothing.
    if compute_dtype is not None:
        x = x.astype(compute_dtype)
        w1 = w1.astype(compute_dtype)
        w2 = w2.astype(compute_dtype)
    b1 = b1.astype(jnp.float32)
    b2 = b2.astype(jnp.float32)

    in_isz = jnp.dtype(x.dtype).itemsize
    out_isz = jnp.dtype(out_dtype).itemsize
    row_mult = 8 if in_isz == 4 else (16 if in_isz == 2 else 32)

    d_p = _round_up(d_model, 128)
    h_p = _round_up(hidden, 128)

    is_v7 = _device_is_v7()
    budget = _vmem_budget_bytes()

    # Token-tile upper bound.  On v7x make sure the parallel axis gets >= 2
    # steps so both TensorCores have work.
    tm_cap = _round_up(n_tok, row_mult)
    if is_v7 and n_tok > row_mult:
        tm_cap = min(tm_cap, _round_up(max(_cdiv(n_tok, 2), row_mult), row_mult))

    w_res_buf = 1 if _HAS_BUFFERED else 2

    # ---- prefer fully VMEM-resident weights (fetched once, no re-streaming) --
    resident_tm = None
    min_res_tm = min(128, tm_cap)     # don't starve the MXU just to stay resident
    for c in _tm_candidates(tm_cap, row_mult, start=512):
        if c < min_res_tm:
            continue
        if _resident_need(c, d_p, h_p, in_isz, out_isz, w_res_buf) <= budget:
            resident_tm = c
            break
    resident = resident_tm is not None

    if resident:
        tm, th, h_pp, n_h = resident_tm, h_p, h_p, 1
    else:
        tm, th = _select_streamed(tm_cap, row_mult, d_p, h_p, in_isz, out_isz,
                                  budget, is_v7)
        h_pp = _round_up(h_p, th)
        n_h = h_pp // th

    n_tok_p = _round_up(n_tok, tm)
    n_i = n_tok_p // tm

    # ---- pad only when actually required (zero padding is exact here) --------
    x2d = _pad2(x.reshape(n_tok, d_model), n_tok_p - n_tok, d_p - d_model)
    w1_p = _pad2(w1, d_p - d_model, h_pp - hidden)
    w2_p = _pad2(w2, h_pp - hidden, d_p - d_model)
    b1_p = _pad2(b1.reshape(1, hidden), 0, h_pp - hidden)
    b2_p = _pad2(b2.reshape(1, d_model), 0, d_p - d_model)

    cost = pl.CostEstimate(
        flops=4 * n_tok_p * d_p * h_pp,
        transcendentals=0,
        bytes_accessed=int(x2d.size * in_isz + w1_p.size * in_isz
                           + w2_p.size * in_isz + b1_p.size * 4 + b2_p.size * 4
                           + n_tok_p * d_p * out_isz),
    )
    cparams = pltpu.CompilerParams(
        dimension_semantics=("parallel",) if resident else ("parallel", "arbitrary"),
        vmem_limit_bytes=budget,
    )

    if resident:
        out2d = pl.pallas_call(
            _ffn_fused_kernel,
            out_shape=jax.ShapeDtypeStruct((n_tok_p, d_p), out_dtype),
            grid_spec=pltpu.PrefetchScalarGridSpec(
                num_scalar_prefetch=0,
                grid=(n_i,),
                in_specs=[
                    pl.BlockSpec((tm, d_p), lambda i: (i, 0)),         # x tile
                    _spec((d_p, h_pp), lambda i: (0, 0), buffers=1),   # W1 resident
                    _spec((1, h_pp), lambda i: (0, 0), buffers=1),     # b1 resident
                    _spec((h_pp, d_p), lambda i: (0, 0), buffers=1),   # W2 resident
                    _spec((1, d_p), lambda i: (0, 0), buffers=1),      # b2 resident
                ],
                out_specs=pl.BlockSpec((tm, d_p), lambda i: (i, 0)),
            ),
            compiler_params=cparams,
            cost_estimate=cost,
        )(x2d, w1_p, b1_p, w2_p, b2_p)
    else:
        # Deeper weight pipelining hides slab DMA at sweep edges when VMEM allows
        # (skip on v7x, whose 64 MiB/TC budget is too tight for a 3rd buffer).
        w_buf = None
        if (not is_v7) and _HAS_BUFFERED and \
                _streamed_need(tm, th, d_p, in_isz, out_isz, 3) <= budget:
            w_buf = 3
        out2d = pl.pallas_call(
            _ffn_tiled_kernel,
            out_shape=jax.ShapeDtypeStruct((n_tok_p, d_p), out_dtype),
            grid_spec=pltpu.PrefetchScalarGridSpec(
                num_scalar_prefetch=0,
                grid=(n_i, n_h),
                in_specs=[
                    pl.BlockSpec((tm, d_p), lambda i, h: (i, 0)),           # x tile
                    _spec((d_p, th), lambda i, h: (0, h), buffers=w_buf),   # W1 slab
                    _spec((1, th), lambda i, h: (0, h), buffers=w_buf),     # b1 slab
                    _spec((th, d_p), lambda i, h: (h, 0), buffers=w_buf),   # W2 slab
                    _spec((1, d_p), lambda i, h: (0, 0), buffers=1),        # b2 resident
                ],
                out_specs=pl.BlockSpec((tm, d_p), lambda i, h: (i, 0)),
                scratch_shapes=[pltpu.VMEM((tm, d_p), jnp.float32)],
            ),
            compiler_params=cparams,
            cost_estimate=cost,
        )(x2d, w1_p, b1_p, w2_p, b2_p)

    if n_tok_p != n_tok or d_p != d_model:
        out2d = out2d[:n_tok, :d_model]
    return out2d.reshape(batch, seq, d_model)


# --------------------------------- test --------------------------------------

if __name__ == "__main__":
    # Small, module-consistent shapes.
    batch, seq = 2, 8
    d_model, hidden_dim = 32, 64

    key = jax.random.PRNGKey(0)
    kx, kw1, kb1, kw2, kb2 = jax.random.split(key, 5)

    x = jax.random.normal(kx, (batch, seq, d_model), dtype=jnp.float32)

    # Deterministic param init (PyTorch Linear stores weight as [out, in];
    # we build directly in [in, out] layout for the kernel).
    scale1 = 1.0 / jnp.sqrt(d_model)
    scale2 = 1.0 / jnp.sqrt(hidden_dim)
    w1 = jax.random.uniform(kw1, (d_model, hidden_dim), jnp.float32, -scale1, scale1)
    b1 = jax.random.uniform(kb1, (hidden_dim,), jnp.float32, -scale1, scale1)
    w2 = jax.random.uniform(kw2, (hidden_dim, d_model), jnp.float32, -scale2, scale2)
    b2 = jax.random.uniform(kb2, (d_model,), jnp.float32, -scale2, scale2)

    # High-precision host reference.
    xn, w1n, b1n = (np.asarray(a, np.float64) for a in (x, w1, b1))
    w2n, b2n = (np.asarray(a, np.float64) for a in (w2, b2))
    y_ref = np.maximum(xn.reshape(-1, d_model) @ w1n + b1n, 0.0) @ w2n + b2n
    y_ref = y_ref.reshape(batch, seq, d_model)

    # f32 compute path (exact-ish check).
    y32 = pointwise_ffn(x, w1, b1, w2, b2, compute_dtype=None)
    jax.block_until_ready(y32)
    assert y32.shape == (batch, seq, d_model)
    assert np.allclose(np.asarray(y32, np.float64), y_ref, atol=1e-4, rtol=1e-4)

    # Default bf16-compute path (f32 accumulation, f32 biases).
    y = pointwise_ffn(x, w1, b1, w2, b2)
    jax.block_until_ready(y)
    assert y.shape == (batch, seq, d_model)
    assert y.dtype == x.dtype
    assert np.allclose(np.asarray(y, np.float64), y_ref, atol=5e-2, rtol=5e-2)

    print("KERNEL_OK")
</pallas_src>

<mosaic_0001>
module attributes {stable_mosaic.version = 11 : i64} {
  func.func @_ffn_fused_kernel(%arg0: i32, %arg1: memref<16x128xf32, #tpu.memory_space<vmem>>, %arg2: memref<128x128xf32, #tpu.memory_space<vmem>>, %arg3: memref<1x128xf32, #tpu.memory_space<vmem>>, %arg4: memref<128x128xf32, #tpu.memory_space<vmem>>, %arg5: memref<1x128xf32, #tpu.memory_space<vmem>>, %arg6: memref<16x128xf32, #tpu.memory_space<vmem>>) attributes {dimension_semantics = [#tpu.dimension_semantics<parallel>], iteration_bounds = array<i64: 1>, scalar_prefetch = 0 : i64, scratch_operands = 0 : i64, tpu.core_type = #tpu.core_type<tc>, window_params = [{transform_indices = @transform_0, window_bounds = array<i64: 16, 128>}, {pipeline_mode = #tpu.pipeline_mode<synchronous>, transform_indices = @transform_1, window_bounds = array<i64: 128, 128>}, {pipeline_mode = #tpu.pipeline_mode<synchronous>, transform_indices = @transform_2, window_bounds = array<i64: 1, 128>}, {pipeline_mode = #tpu.pipeline_mode<synchronous>, transform_indices = @transform_3, window_bounds = array<i64: 128, 128>}, {pipeline_mode = #tpu.pipeline_mode<synchronous>, transform_indices = @transform_4, window_bounds = array<i64: 1, 128>}, {transform_indices = @transform_5, window_bounds = array<i64: 16, 128>}]} {
    %c0 = arith.constant 0 : index
    %c0_0 = arith.constant 0 : index
    %0 = vector.load %arg1[%c0, %c0_0] : memref<16x128xf32, #tpu.memory_space<vmem>>, vector<16x128xf32>
    %c0_1 = arith.constant 0 : index
    %c0_2 = arith.constant 0 : index
    %1 = vector.load %arg2[%c0_1, %c0_2] : memref<128x128xf32, #tpu.memory_space<vmem>>, vector<128x128xf32>
    %cst = arith.constant dense<0.000000e+00> : vector<16x128xf32>
    %2 = tpu.matmul %0, %1, %cst {dimension_numbers = #tpu.dot_dimension_numbers<[1], [0], [0], [1], [0, 0, 1, 1], [], []>} : vector<16x128xf32>, vector<128x128xf32>, vector<16x128xf32> -> vector<16x128xf32>
    %c0_3 = arith.constant 0 : index
    %c0_4 = arith.constant 0 : index
    %3 = vector.load %arg3[%c0_3, %c0_4] : memref<1x128xf32, #tpu.memory_space<vmem>>, vector<1x128xf32>
    %4 = vector.broadcast %3 : vector<1x128xf32> to vector<16x128xf32>
    %5 = arith.addf %2, %4 : vector<16x128xf32>
    %cst_5 = arith.constant 0.000000e+00 : f32
    %6 = vector.broadcast %cst_5 : f32 to vector<16x128xf32>
    %7 = arith.maximumf %5, %6 : vector<16x128xf32>
    %c0_6 = arith.constant 0 : index
    %c0_7 = arith.constant 0 : index
    %8 = vector.load %arg4[%c0_6, %c0_7] : memref<128x128xf32, #tpu.memory_space<vmem>>, vector<128x128xf32>
    %cst_8 = arith.constant dense<0.000000e+00> : vector<16x128xf32>
    %9 = tpu.matmul %7, %8, %cst_8 {dimension_numbers = #tpu.dot_dimension_numbers<[1], [0], [0], [1], [0, 0, 1, 1], [], []>} : vector<16x128xf32>, vector<128x128xf32>, vector<16x128xf32> -> vector<16x128xf32>
    %c0_9 = arith.constant 0 : index
    %c0_10 = arith.constant 0 : index
    %10 = vector.load %arg5[%c0_9, %c0_10] : memref<1x128xf32, #tpu.memory_space<vmem>>, vector<1x128xf32>
    %11 = vector.broadcast %10 : vector<1x128xf32> to vector<16x128xf32>
    %12 = arith.addf %9, %11 : vector<16x128xf32>
    %c0_11 = arith.constant 0 : index
    %c0_12 = arith.constant 0 : index
    %13 = vector.load %arg6[%c0_11, %c0_12] : memref<16x128xf32, #tpu.memory_space<vmem>>, vector<16x128xf32>
    tpu.vector_store %arg6[%c0_11, %c0_12], %12 {strides = array<i32>} : memref<16x128xf32, #tpu.memory_space<vmem>>, vector<16x128xf32>,
    return
  }
  func.func @transform_0(%arg0: i32) -> (i32, i32) {
    %c0_i32 = arith.constant 0 : i32
    %c0_i32_0 = arith.constant 0 : i32
    return %arg0, %c0_i32 : i32, i32
  }
  func.func @transform_1(%arg0: i32) -> (i32, i32) {
    %c0_i32 = arith.constant 0 : i32
    %c0_i32_0 = arith.constant 0 : i32
    %c0_i32_1 = arith.constant 0 : i32
    return %c0_i32, %c0_i32_0 : i32, i32
  }
  func.func @transform_2(%arg0: i32) -> (i32, i32) {
    %c0_i32 = arith.constant 0 : i32
    %c0_i32_0 = arith.constant 0 : i32
    %c0_i32_1 = arith.constant 0 : i32
    return %c0_i32, %c0_i32_0 : i32, i32
  }
  func.func @transform_3(%arg0: i32) -> (i32, i32) {
    %c0_i32 = arith.constant 0 : i32
    %c0_i32_0 = arith.constant 0 : i32
    %c0_i32_1 = arith.constant 0 : i32
    return %c0_i32, %c0_i32_0 : i32, i32
  }
  func.func @transform_4(%arg0: i32) -> (i32, i32) {
    %c0_i32 = arith.constant 0 : i32
    %c0_i32_0 = arith.constant 0 : i32
    %c0_i32_1 = arith.constant 0 : i32
    return %c0_i32, %c0_i32_0 : i32, i32
  }
  func.func @transform_5(%arg0: i32) -> (i32, i32) {
    %c0_i32 = arith.constant 0 : i32
    %c0_i32_0 = arith.constant 0 : i32
    return %arg0, %c0_i32 : i32, i32
  }
}

</mosaic_0001>

<llo_original>
// kernel: tpu_custom_call.1
$region0: #{tpu_custom_call.1}
  #allocation0 [shape = 'u32[]', space=smem, size = 0x4, offset = 0x4, fixed_abs, tag = 'smem constant byte address 0x4 - core index']
  #allocation1 [shape = 'u32[144,128]{1,0:T(1,128)}', space=vmem, size = 0x12000, scoped, tag = 'internal scratch']
  %s0 = inlined_call_operand.hbm [shape: f32[16,128], index: 0, kind: input, shape index: {}]
  %s1 = inlined_call_operand.hbm [shape: f32[128,128], index: 1, kind: input, shape index: {}]
  %s2 = inlined_call_operand.hbm [shape: f32[1,128], index: 2, kind: input, shape index: {}]
  %s3 = inlined_call_operand.hbm [shape: f32[128,128], index: 3, kind: input, shape index: {}]
  %s4 = inlined_call_operand.hbm [shape: f32[1,128], index: 4, kind: input, shape index: {}]
  %s5 = inlined_call_operand.hbm [shape: f32[16,128], index: 5, kind: output, shape index: {}]
  %s6 = sld [smem:[#allocation0]]
  $region50: #{tpu_custom_call.1} parent=0
    _
  %s8 = ssub.s32 1, %s6
  %s9 = scalar_select 0, %s8, %s6
  $region1: #{tpu_custom_call.1} parent=0
    #allocation2 [shape = 'u8[8192]{0}', space=vmem, size = 0x2000, scoped, tag = 'input window, operand 0, single buffered']
    #allocation3 [shape = 's32[1]{0}', space=sflag, size = 0x4, scoped, tag = 'scoped memory for tpu_custom_call.1']
    #allocation4 [shape = 's32[1]{0}', space=sflag, size = 0x4, scoped, tag = 'scoped memory for tpu_custom_call.1']
    #allocation5 [shape = 'u8[65536]{0}', space=vmem, size = 0x10000, scoped, tag = 'input window, operand 1, single buffered']
    #allocation6 [shape = 's32[1]{0}', space=sflag, size = 0x4, scoped, tag = 'scoped memory for tpu_custom_call.1']
    #allocation7 [shape = 'u8[512]{0}', space=vmem, size = 0x400, scoped, tag = 'input window, operand 2, single buffered']
    #allocation8 [shape = 'u8[65536]{0}', space=vmem, size = 0x10000, scoped, tag = 'input window, operand 3, single buffered']
    #allocation9 [shape = 's32[1]{0}', space=sflag, size = 0x4, scoped, tag = 'scoped memory for tpu_custom_call.1']
    #allocation10 [shape = 'u8[512]{0}', space=vmem, size = 0x400, scoped, tag = 'input window, operand 4, single buffered']
    #allocation11 [shape = 'u8[8192]{0}', space=vmem, size = 0x2000, scoped, tag = 'output window, operand 0, single buffered']
    %10 = vsyncpa [#allocation3], 0
    %11 = vsyncpa [#allocation6], 0
    %12 = vsyncpa [#allocation9], 0
    %13 = vsyncpa [#allocation4], 0
    // Predicated region
    $region2: #{tpu_custom_call.1} parent=1 // pred_check
      _
    $region3: #{tpu_custom_call.1} parent=1 // pred_check_branch
      %15 = sbr.rel (0) target = $region5
    $region4: #{tpu_custom_call.1} parent=1 // pred_region
      %s17 = ssub.s32 256, 256
      %18 = vsyncadd [#allocation3], %s17
      %s19 = sshll.u32 [#allocation2], 4
      %s20 = int_to_ptr.vmem [resolvable:$true] %s19
      %25 = dma.hbm_to_vmem [thread:$0]  %s0, 256, %s20, [#allocation3], 128, 128, 8
    $region5: #{tpu_custom_call.1} parent=1 // pred_fallthru
      _
    // Predicated region
    $region6: #{tpu_custom_call.1} parent=1 // pred_check
      _
    $region7: #{tpu_custom_call.1} parent=1 // pred_check_branch
      %27 = sbr.rel (0) target = $region9
    $region8: #{tpu_custom_call.1} parent=1 // pred_region
      %s29 = ssub.s32 2048, 2048
      %30 = vsyncadd [#allocation6], %s29
      %s31 = sshll.u32 [#allocation5], 4
      %s32 = int_to_ptr.vmem [resolvable:$true] %s31
      %37 = dma.hbm_to_vmem [thread:$0]  %s1, 2048, %s32, [#allocation6], 128, 128, 8
    $region9: #{tpu_custom_call.1} parent=1 // pred_fallthru
      _
    // Predicated region
    $region10: #{tpu_custom_call.1} parent=1 // pred_check
      _
    $region11: #{tpu_custom_call.1} parent=1 // pred_check_branch
      %39 = sbr.rel (0) target = $region13
    $region12: #{tpu_custom_call.1} parent=1 // pred_region
      %s41 = ssub.s32 16, 16
      %42 = vsyncadd [#allocation6], %s41
      %s44 = sshll.u32 [#allocation7], 4
      %s45 = int_to_ptr.vmem [resolvable:$true] %s44
      %47 = dma.hbm_to_vmem [thread:$0]  %s2, 16, %s45, [#allocation6]
    $region13: #{tpu_custom_call.1} parent=1 // pred_fallthru
      _
    // Predicated region
    $region14: #{tpu_custom_call.1} parent=1 // pred_check
      _
    $region15: #{tpu_custom_call.1} parent=1 // pred_check_branch
      %49 = sbr.rel (0) target = $region17
    $region16: #{tpu_custom_call.1} parent=1 // pred_region
      %s51 = ssub.s32 2048, 2048
      %52 = vsyncadd [#allocation9], %s51
      %s53 = sshll.u32 [#allocation8], 4
      %s54 = int_to_ptr.vmem [resolvable:$true] %s53
      %59 = dma.hbm_to_vmem [thread:$0]  %s3, 2048, %s54, [#allocation9], 128, 128, 8
    $region17: #{tpu_custom_call.1} parent=1 // pred_fallthru
      _
    // Predicated region
    $region18: #{tpu_custom_call.1} parent=1 // pred_check
      _
    $region19: #{tpu_custom_call.1} parent=1 // pred_check_branch
      %61 = sbr.rel (0) target = $region21
    $region20: #{tpu_custom_call.1} parent=1 // pred_region
      %s63 = ssub.s32 16, 16
      %64 = vsyncadd [#allocation9], %s63
      %s66 = sshll.u32 [#allocation10], 4
      %s67 = int_to_ptr.vmem [resolvable:$true] %s66
      %69 = dma.hbm_to_vmem [thread:$0]  %s4, 16, %s67, [#allocation9]
    $region21: #{tpu_custom_call.1} parent=1 // pred_fallthru
      _
    // Predicated region
    $region22: #{tpu_custom_call.1} parent=1 // pred_check
      _
    $region23: #{tpu_custom_call.1} parent=1 // pred_check_branch
      %71 = sbr.rel (0) target = $region25
    $region24: #{tpu_custom_call.1} parent=1 // pred_region
      %72 = dma.done [#allocation3], 256
    $region25: #{tpu_custom_call.1} parent=1 // pred_fallthru
      _
    // Predicated region
    $region26: #{tpu_custom_call.1} parent=1 // pred_check
      _
    $region27: #{tpu_custom_call.1} parent=1 // pred_check_branch
      %74 = sbr.rel (0) target = $region29
    $region28: #{tpu_custom_call.1} parent=1 // pred_region
      %75 = dma.done [#allocation6], 2048
    $region29: #{tpu_custom_call.1} parent=1 // pred_fallthru
      _
    // Predicated region
    $region30: #{tpu_custom_call.1} parent=1 // pred_check
      _
    $region31: #{tpu_custom_call.1} parent=1 // pred_check_branch
      %77 = sbr.rel (0) target = $region33
    $region32: #{tpu_custom_call.1} parent=1 // pred_region
      %78 = dma.done [#allocation6], 16
    $region33: #{tpu_custom_call.1} parent=1 // pred_fallthru
      _
    // Predicated region
    $region34: #{tpu_custom_call.1} parent=1 // pred_check
      _
    $region35: #{tpu_custom_call.1} parent=1 // pred_check_branch
      %80 = sbr.rel (0) target = $region37
    $region36: #{tpu_custom_call.1} parent=1 // pred_region
      %81 = dma.done [#allocation9], 2048
    $region37: #{tpu_custom_call.1} parent=1 // pred_fallthru
      _
    // Predicated region
    $region38: #{tpu_custom_call.1} parent=1 // pred_check
      _
    $region39: #{tpu_custom_call.1} parent=1 // pred_check_branch
      %83 = sbr.rel (0) target = $region41
    $region40: #{tpu_custom_call.1} parent=1 // pred_region
      %84 = dma.done [#allocation9], 16
    $region41: #{tpu_custom_call.1} parent=1 // pred_fallthru
      _
    %v85 = vld [vmem:[#allocation2] sm:$0xff]
    %v86 = vld [vmem:[#allocation2 + $0x8] sm:$0xff]
    %v87 = vld [vmem:[#allocation5] sm:$0xff]
    %v88 = vld [vmem:[#allocation5 + $0x8] sm:$0xff]
    %v89 = vld [vmem:[#allocation5 + $0x10] sm:$0xff]
    %v90 = vld [vmem:[#allocation5 + $0x18] sm:$0xff]
    %v91 = vld [vmem:[#allocation5 + $0x20] sm:$0xff]
    %v92 = vld [vmem:[#allocation5 + $0x28] sm:$0xff]
    %v93 = vld [vmem:[#allocation5 + $0x30] sm:$0xff]
    %v94 = vld [vmem:[#allocation5 + $0x38] sm:$0xff]
    %v95 = vld [vmem:[#allocation5 + $0x40] sm:$0xff]
    %v96 = vld [vmem:[#allocation5 + $0x48] sm:$0xff]
    %v97 = vld [vmem:[#allocation5 + $0x50] sm:$0xff]
    %v98 = vld [vmem:[#allocation5 + $0x58] sm:$0xff]
    %v99 = vld [vmem:[#allocation5 + $0x60] sm:$0xff]
    %v100 = vld [vmem:[#allocation5 + $0x68] sm:$0xff]
    %v101 = vld [vmem:[#allocation5 + $0x70] sm:$0xff]
    %v102 = vld [vmem:[#allocation5 + $0x78] sm:$0xff]
    %v103 = vld [vmem:[#allocation7] sm:$0x1]
    %v105 = vlaneseq
    %v106 = vshrl.u32 %v105, 7
    %v107 = vsub.s32 0, %v106
    %v108 = vrot.slane %v103, %v107
    %110 = vmatprep.subr.mxu0 0.0
    %111 = vmatpush1.msra.mxu0 %v87
    %112 = vmatprep.subr.mxu0 0.0
    %113 = vmatpush1.msra.mxu0 %v88
    %114 = vmatprep.subr.mxu0 0.0
    %115 = vmatpush1.msra.mxu0 %v89
    %116 = vmatprep.subr.mxu0 0.0
    %117 = vmatpush1.msra.mxu0 %v90
    %118 = vmatprep.subr.mxu0 0.0
    %119 = vmatpush1.msra.mxu0 %v91
    %120 = vmatprep.subr.mxu0 0.0
    %121 = vmatpush1.msra.mxu0 %v92
    %122 = vmatprep.subr.mxu0 0.0
    %123 = vmatpush1.msra.mxu0 %v93
    %124 = vmatprep.subr.mxu0 0.0
    %125 = vmatpush1.msra.mxu0 %v94
    %126 = vmatprep.subr.mxu0 0.0
    %127 = vmatpush1.msra.mxu0 %v95
    %128 = vmatprep.subr.mxu0 0.0
    %129 = vmatpush1.msra.mxu0 %v96
    %130 = vmatprep.subr.mxu0 0.0
    %131 = vmatpush1.msra.mxu0 %v97
    %132 = vmatprep.subr.mxu0 0.0
    %133 = vmatpush1.msra.mxu0 %v98
    %134 = vmatprep.subr.mxu0 0.0
    %135 = vmatpush1.msra.mxu0 %v99
    %136 = vmatprep.subr.mxu0 0.0
    %137 = vmatpush1.msra.mxu0 %v100
    %138 = vmatprep.subr.mxu0 0.0
    %139 = vmatpush1.msra.mxu0 %v101
    %140 = vmatprep.subr.mxu0 0.0
    %141 = vmatpush1.msra.mxu0 %v102
    %142 = vmatprep.subr.mxu0 0.0
    %143 = vmatpush1.msra.mxu0 0.0
    %144 = vmatprep.subr.mxu0 0.0
    %145 = vmatpush1.msra.mxu0 0.0
    %146 = vmatprep.subr.mxu0 0.0
    %147 = vmatpush1.msra.mxu0 0.0
    %148 = vmatprep.subr.mxu0 0.0
    %149 = vmatpush1.msra.mxu0 0.0
    %150 = vmatprep.subr.mxu0 0.0
    %151 = vmatpush1.msra.mxu0 0.0
    %152 = vmatprep.subr.mxu0 0.0
    %153 = vmatpush1.msra.mxu0 0.0
    %154 = vmatprep.subr.mxu0 0.0
    %155 = vmatpush1.msra.mxu0 0.0
    %156 = vmatprep.subr.mxu0 0.0
    %157 = vmatpush1.msra.mxu0 0.0
    %158 = vmatprep.subr.mxu0 0.0
    %159 = vmatpush1.msra.mxu0 0.0
    %160 = vmatprep.subr.mxu0 0.0
    %161 = vmatpush1.msra.mxu0 0.0
    %162 = vmatprep.subr.mxu0 0.0
    %163 = vmatpush1.msra.mxu0 0.0
    %164 = vmatprep.subr.mxu0 0.0
    %165 = vmatpush1.msra.mxu0 0.0
    %166 = vmatprep.subr.mxu0 0.0
    %167 = vmatpush1.msra.mxu0 0.0
    %168 = vmatprep.subr.mxu0 0.0
    %169 = vmatpush1.msra.mxu0 0.0
    %170 = vmatprep.subr.mxu0 0.0
    %171 = vmatpush1.msra.mxu0 0.0
    %172 = vmatprep.subr.mxu0 0.0
    %173 = vmatpush1.msra.mxu0 0.0
    %174 = vmatprep.mubr.f32.mxu0 0.0
    %175 = vmatmul.mubr.f32.gmra.mrb[0].mxu0 %v85
    %v176 = vpop.f32.mrb[0].mxu0
    %v177 = vadd.f32 %v108, %v176
    %v178 = vpop.f32.mrb[0].mxu0
    %179 = vmatprep.mubr.f32.mxu0 0.0
    %180 = vmatmul.mubr.f32.gmra.mrb[0].mxu0 %v86
    %v181 = vpop.f32.mrb[0].mxu0
    %v182 = vadd.f32 %v108, %v181
    %v183 = vpop.f32.mrb[0].mxu0
    %184 = vdwg.mxu0
    %v185 = vmax.f32 %v177, 0.0
    %v186 = vmax.f32 %v182, 0.0
    %v187 = vld [vmem:[#allocation8] sm:$0xff]
    %v188 = vld [vmem:[#allocation8 + $0x8] sm:$0xff]
    %v189 = vld [vmem:[#allocation8 + $0x10] sm:$0xff]
    %v190 = vld [vmem:[#allocation8 + $0x18] sm:$0xff]
    %v191 = vld [vmem:[#allocation8 + $0x20] sm:$0xff]
    %v192 = vld [vmem:[#allocation8 + $0x28] sm:$0xff]
    %v193 = vld [vmem:[#allocation8 + $0x30] sm:$0xff]
    %v194 = vld [vmem:[#allocation8 + $0x38] sm:$0xff]
    %v195 = vld [vmem:[#allocation8 + $0x40] sm:$0xff]
    %v196 = vld [vmem:[#allocation8 + $0x48] sm:$0xff]
    %v197 = vld [vmem:[#allocation8 + $0x50] sm:$0xff]
    %v198 = vld [vmem:[#allocation8 + $0x58] sm:$0xff]
    %v199 = vld [vmem:[#allocation8 + $0x60] sm:$0xff]
    %v200 = vld [vmem:[#allocation8 + $0x68] sm:$0xff]
    %v201 = vld [vmem:[#allocation8 + $0x70] sm:$0xff]
    %v202 = vld [vmem:[#allocation8 + $0x78] sm:$0xff]
    %v203 = vld [vmem:[#allocation10] sm:$0x1]
    %v205 = vlaneseq
    %v206 = vshrl.u32 %v205, 7
    %v207 = vsub.s32 0, %v206
    %v208 = vrot.slane %v203, %v207
    %210 = vmatprep.subr.mxu0 0.0
    %211 = vmatpush1.msra.mxu0 %v187
    %212 = vmatprep.subr.mxu0 0.0
    %213 = vmatpush1.msra.mxu0 %v188
    %214 = vmatprep.subr.mxu0 0.0
    %215 = vmatpush1.msra.mxu0 %v189
    %216 = vmatprep.subr.mxu0 0.0
    %217 = vmatpush1.msra.mxu0 %v190
    %218 = vmatprep.subr.mxu0 0.0
    %219 = vmatpush1.msra.mxu0 %v191
    %220 = vmatprep.subr.mxu0 0.0
    %221 = vmatpush1.msra.mxu0 %v192
    %222 = vmatprep.subr.mxu0 0.0
    %223 = vmatpush1.msra.mxu0 %v193
    %224 = vmatprep.subr.mxu0 0.0
    %225 = vmatpush1.msra.mxu0 %v194
    %226 = vmatprep.subr.mxu0 0.0
    %227 = vmatpush1.msra.mxu0 %v195
    %228 = vmatprep.subr.mxu0 0.0
    %229 = vmatpush1.msra.mxu0 %v196
    %230 = vmatprep.subr.mxu0 0.0
    %231 = vmatpush1.msra.mxu0 %v197
    %232 = vmatprep.subr.mxu0 0.0
    %233 = vmatpush1.msra.mxu0 %v198
    %234 = vmatprep.subr.mxu0 0.0
    %235 = vmatpush1.msra.mxu0 %v199
    %236 = vmatprep.subr.mxu0 0.0
    %237 = vmatpush1.msra.mxu0 %v200
    %238 = vmatprep.subr.mxu0 0.0
    %239 = vmatpush1.msra.mxu0 %v201
    %240 = vmatprep.subr.mxu0 0.0
    %241 = vmatpush1.msra.mxu0 %v202
    %242 = vmatprep.subr.mxu0 0.0
    %243 = vmatpush1.msra.mxu0 0.0
    %244 = vmatprep.subr.mxu0 0.0
    %245 = vmatpush1.msra.mxu0 0.0
    %246 = vmatprep.subr.mxu0 0.0
    %247 = vmatpush1.msra.mxu0 0.0
    %248 = vmatprep.subr.mxu0 0.0
    %249 = vmatpush1.msra.mxu0 0.0
    %250 = vmatprep.subr.mxu0 0.0
    %251 = vmatpush1.msra.mxu0 0.0
    %252 = vmatprep.subr.mxu0 0.0
    %253 = vmatpush1.msra.mxu0 0.0
    %254 = vmatprep.subr.mxu0 0.0
    %255 = vmatpush1.msra.mxu0 0.0
    %256 = vmatprep.subr.mxu0 0.0
    %257 = vmatpush1.msra.mxu0 0.0
    %258 = vmatprep.subr.mxu0 0.0
    %259 = vmatpush1.msra.mxu0 0.0
    %260 = vmatprep.subr.mxu0 0.0
    %261 = vmatpush1.msra.mxu0 0.0
    %262 = vmatprep.subr.mxu0 0.0
    %263 = vmatpush1.msra.mxu0 0.0
    %264 = vmatprep.subr.mxu0 0.0
    %265 = vmatpush1.msra.mxu0 0.0
    %266 = vmatprep.subr.mxu0 0.0
    %267 = vmatpush1.msra.mxu0 0.0
    %268 = vmatprep.subr.mxu0 0.0
    %269 = vmatpush1.msra.mxu0 0.0
    %270 = vmatprep.subr.mxu0 0.0
    %271 = vmatpush1.msra.mxu0 0.0
    %272 = vmatprep.subr.mxu0 0.0
    %273 = vmatpush1.msra.mxu0 0.0
    %274 = vmatprep.mubr.f32.mxu0 0.0
    %275 = vmatmul.mubr.f32.gmra.mrb[0].mxu0 %v185
    %v276 = vpop.f32.mrb[0].mxu0
    %v277 = vadd.f32 %v208, %v276
    %v278 = vpop.f32.mrb[0].mxu0
    %279 = vmatprep.mubr.f32.mxu0 0.0
    %280 = vmatmul.mubr.f32.gmra.mrb[0].mxu0 %v186
    %v281 = vpop.f32.mrb[0].mxu0
    %v282 = vadd.f32 %v208, %v281
    %v283 = vpop.f32.mrb[0].mxu0
    %284 = vdwg.mxu0
    %285 = vst [vmem:[#allocation11] sm:$0xff] %v277
    %286 = vst [vmem:[#allocation11 + $0x8] sm:$0xff] %v282
    // Predicated region
    $region42: #{tpu_custom_call.1} parent=1 // pred_check
      _
    $region43: #{tpu_custom_call.1} parent=1 // pred_check_branch
      %288 = sbr.rel (0) target = $region45
    $region44: #{tpu_custom_call.1} parent=1 // pred_region
      %s290 = ssub.s32 256, 256
      %291 = vsyncadd [#allocation4], %s290
      %s292 = sshll.u32 [#allocation11], 4
      %s293 = int_to_ptr.vmem [resolvable:$true] %s292
      %298 = dma.vmem_to_hbm [thread:$0]  %s293, 256, %s5, [#allocation4], 128, 128, 8
    $region45: #{tpu_custom_call.1} parent=1 // pred_fallthru
      _
    // Predicated region
    $region46: #{tpu_custom_call.1} parent=1 // pred_check
      _
    $region47: #{tpu_custom_call.1} parent=1 // pred_check_branch
      %300 = sbr.rel (0) target = $region49
    $region48: #{tpu_custom_call.1} parent=1 // pred_region
      %301 = dma.done [#allocation4], 256
    $region49: #{tpu_custom_call.1} parent=1 // pred_fallthru
      _
    %302 = vsyncpa [#allocation3], 1
    %303 = vsyncpa [#allocation6], 1
    %304 = vsyncpa [#allocation9], 1
    %305 = vsyncpa [#allocation4], 1

</llo_original>
